<compile_context>
chip_gen: v7x
topology: tpu7x:2x2x1
jax: 0.10.0
libtpu: 0.0.40
codegen_flags: <defaults>
</compile_context>

<pallas_src>
import functools

import jax
import jax.numpy as jnp
from jax.experimental import pallas as pl
from jax.experimental.pallas import tpu as pltpu


def _mask_kernel(tile_ref, off_ref, embed_ref, mask_ref, out_ref):
    """One grid step == one (batch, mask-occurrence) pair.

    tile_ref  : SMEM (2*B,) int32 -- sequence-tile index of each occurrence
    off_ref   : SMEM (2*B,) int32 -- row offset inside that tile
    embed_ref : VMEM (1, TS, D)   -- input tile holding this mask token
    mask_ref  : VMEM (2, D)       -- mask rows 0/1, pre-cast to embed dtype
    out_ref   : VMEM (1, TS, D)   -- aliased output tile
    """
    b = pl.program_id(0)
    m = pl.program_id(1)              # 0 -> first occurrence, 1 -> second

    # Tile is freshly fetched unless this is the 2nd occurrence and it lands
    # in the same tile as the 1st; in that case the output block is resident
    # and already holds the first replacement -- don't clobber it.
    fresh = jnp.logical_or(m == 0, tile_ref[2 * b] != tile_ref[2 * b + 1])

    @pl.when(fresh)
    def _():
        out_ref[0] = embed_ref[0]

    # Overwrite exactly one row with the mask embedding (dynamic sublane store).
    off = off_ref[2 * b + m]
    out_ref[0, pl.ds(off, 1), :] = mask_ref[pl.ds(m, 1), :]


@functools.partial(
    jax.jit,
    static_argnames=("mask_id",),
    donate_argnames=("input_embed",),  # donation => the alias is truly in-place
)
def mask_forward(input_ids, input_embed, mask_param, *, mask_id):
    """Functional equivalent of Mask.forward.

    Assumes (like the PyTorch reshape(bz, 2, -1)) exactly two `mask_id`
    tokens per batch row.  input_embed is donated and aliased to the output,
    so only the touched sequence tiles are streamed through the TensorCore.
    """
    B, S = input_ids.shape
    Be, Se, D = input_embed.shape
    assert (B, S) == (Be, Se)

    itemsize = jnp.dtype(input_embed.dtype).itemsize
    # One full packed sublane tile: 8 rows (4-byte), 16 (2-byte), 32 (1-byte).
    TS = max(8, 32 // max(itemsize, 1))

    # Never fall back to TS = S: pad ragged sequences to a sublane multiple.
    S_pad = S
    if S % 8 != 0:
        # TODO(synk): ragged S costs one pad copy (and loses the in-place alias).
        pad = (-S) % 8
        input_embed = jnp.pad(input_embed, ((0, 0), (0, pad), (0, 0)))
        S_pad = S + pad
    while S_pad % TS != 0:
        TS //= 2  # lands on >= 8 because S_pad % 8 == 0

    # ---- glue: per-row positions of the two mask tokens (host/XLA side) ----
    iota = jnp.arange(S, dtype=jnp.int32)[None, :]                 # (1, S)
    pos = jnp.where(input_ids == mask_id, iota, jnp.int32(S))      # (B, S)
    pos = jnp.sort(pos, axis=-1)[:, :2]                            # (B, 2)
    # Safety clamp (spec guarantees two tokens/row; avoids OOB DMA otherwise).
    pos = jnp.minimum(pos, S - 1).astype(jnp.int32).reshape(-1)    # (2*B,)
    tile_idx = pos // TS                                           # (2*B,)
    row_off = pos % TS                                             # (2*B,)

    # Only rows 0/1 of the mask are used by forward; pre-cast once.
    mask2 = mask_param[:2].astype(input_embed.dtype)               # (2, D)

    # Same data-dependent tile for input and (aliased) output.
    embed_spec = pl.BlockSpec(
        (1, TS, D), lambda b, m, tile, off: (b, tile[2 * b + m], 0))

    grid_spec = pltpu.PrefetchScalarGridSpec(
        num_scalar_prefetch=2,
        grid=(B, 2),
        in_specs=[
            embed_spec,                                            # embeddings
            pl.BlockSpec((2, D), lambda b, m, tile, off: (0, 0)),  # mask rows
        ],
        out_specs=embed_spec,
    )

    cost = pl.CostEstimate(
        flops=0,
        transcendentals=0,
        bytes_accessed=int(2 * B * 2 * TS * D * itemsize + 2 * D * itemsize),
    )

    out = pl.pallas_call(
        _mask_kernel,
        out_shape=jax.ShapeDtypeStruct((B, S_pad, D), input_embed.dtype),
        grid_spec=grid_spec,
        # operands: (tile_idx, row_off, input_embed, mask2) -> alias embed to out 0
        input_output_aliases={2: 0},
        compiler_params=pltpu.CompilerParams(
            dimension_semantics=("parallel", "arbitrary")),
        cost_estimate=cost,
    )(tile_idx, row_off, input_embed, mask2)

    return out[:, :S, :] if S_pad != S else out


if __name__ == "__main__":
    B, S, D = 2, 16, 128
    MASK_ID = 103  # e.g. BERT [MASK] id

    key = jax.random.PRNGKey(0)
    k_ids, k_emb, k_mask = jax.random.split(key, 3)

    # Exactly two MASK_ID tokens per row.  Row 0: both positions inside the
    # same sublane tile; row 1: positions in different tiles (covers both
    # kernel paths: resident-block reuse and fresh-tile copy).
    input_ids = jax.random.randint(k_ids, (B, S), 0, 100, dtype=jnp.int32)
    input_ids = input_ids.at[0, 2].set(MASK_ID).at[0, 5].set(MASK_ID)
    input_ids = input_ids.at[1, 1].set(MASK_ID).at[1, 14].set(MASK_ID)

    input_embed = jax.random.normal(k_emb, (B, S, D), dtype=jnp.float32)
    # Parameter: bert_embedding([mask_id]*3) -> (3, D); random but distinct rows.
    mask_param = jax.random.normal(k_mask, (3, D), dtype=jnp.float32)

    # Reference (mirrors the PyTorch double loop).  Computed BEFORE calling
    # the kernel because input_embed is donated to it.
    ref = input_embed
    ref = ref.at[0, 2, :].set(mask_param[0]).at[0, 5, :].set(mask_param[1])
    ref = ref.at[1, 1, :].set(mask_param[0]).at[1, 14, :].set(mask_param[1])
    ref = jax.block_until_ready(ref)

    out = mask_forward(input_ids, input_embed, mask_param, mask_id=MASK_ID)
    out = jax.block_until_ready(out)

    assert out.shape == (B, S, D) and out.dtype == jnp.float32
    assert jnp.allclose(out, ref, atol=1e-6), "mismatch vs reference"
    print("KERNEL_OK")
</pallas_src>

<mosaic_0001>
module attributes {stable_mosaic.version = 11 : i64} {
  func.func @_mask_kernel(%arg0: i32, %arg1: i32, %arg2: memref<4xi32, #tpu.memory_space<smem>>, %arg3: memref<4xi32, #tpu.memory_space<smem>>, %arg4: memref<1x8x128xf32, #tpu.memory_space<vmem>>, %arg5: memref<2x128xf32, #tpu.memory_space<vmem>>, %arg6: memref<1x8x128xf32, #tpu.memory_space<vmem>>) attributes {dimension_semantics = [#tpu.dimension_semantics<parallel>, #tpu.dimension_semantics<arbitrary>], iteration_bounds = array<i64: 2, 2>, scalar_prefetch = 2 : i64, scratch_operands = 0 : i64, tpu.core_type = #tpu.core_type<tc>, window_params = [{transform_indices = @transform_0, window_bounds = array<i64: 1, 8, 128>}, {pipeline_mode = #tpu.pipeline_mode<synchronous>, transform_indices = @transform_1, window_bounds = array<i64: 2, 128>}, {transform_indices = @transform_2, window_bounds = array<i64: 1, 8, 128>}]} {
    %c0_i32 = arith.constant 0 : i32
    %0 = arith.cmpi eq, %arg1, %c0_i32 : i32
    %c2_i32 = arith.constant 2 : i32
    %1 = arith.muli %c2_i32, %arg0 : i32
    %2 = arith.index_cast %1 : i32 to index
    %3 = memref.load %arg2[%2] : memref<4xi32, #tpu.memory_space<smem>>
    %c2_i32_0 = arith.constant 2 : i32
    %4 = arith.muli %c2_i32_0, %arg0 : i32
    %c1_i32 = arith.constant 1 : i32
    %5 = arith.addi %4, %c1_i32 : i32
    %6 = arith.index_cast %5 : i32 to index
    %7 = memref.load %arg2[%6] : memref<4xi32, #tpu.memory_space<smem>>
    %8 = arith.cmpi ne, %3, %7 : i32
    %9 = arith.ori %0, %8 : i1
    %10 = arith.extui %9 : i1 to i32
    %c0_i32_1 = arith.constant 0 : i32
    %11 = arith.cmpi ne, %10, %c0_i32_1 : i32
    scf.if %11 {
      %c0_5 = arith.constant 0 : index
      %c0_6 = arith.constant 0 : index
      %c0_7 = arith.constant 0 : index
      %22 = vector.load %arg4[%c0_5, %c0_6, %c0_7] : memref<1x8x128xf32, #tpu.memory_space<vmem>>, vector<1x8x128xf32>
      %23 = vector.shape_cast %22 : vector<1x8x128xf32> to vector<8x128xf32>
      %c0_8 = arith.constant 0 : index
      %c0_9 = arith.constant 0 : index
      %c0_10 = arith.constant 0 : index
      %24 = vector.load %arg6[%c0_8, %c0_9, %c0_10] : memref<1x8x128xf32, #tpu.memory_space<vmem>>, vector<1x8x128xf32>
      %25 = vector.shape_cast %24 : vector<1x8x128xf32> to vector<8x128xf32>
      %26 = vector.shape_cast %23 : vector<8x128xf32> to vector<1x8x128xf32>
      tpu.vector_store %arg6[%c0_8, %c0_9, %c0_10], %26 {strides = array<i32>} : memref<1x8x128xf32, #tpu.memory_space<vmem>>, vector<1x8x128xf32>,
    } else {
    }
    %c2_i32_2 = arith.constant 2 : i32
    %12 = arith.muli %c2_i32_2, %arg0 : i32
    %13 = arith.addi %12, %arg1 : i32
    %14 = arith.index_cast %13 : i32 to index
    %15 = memref.load %arg3[%14] : memref<4xi32, #tpu.memory_space<smem>>
    %16 = arith.index_cast %arg1 : i32 to index
    %c0 = arith.constant 0 : index
    %17 = vector.load %arg5[%16, %c0] : memref<2x128xf32, #tpu.memory_space<vmem>>, vector<1x128xf32>
    %c0_3 = arith.constant 0 : index
    %18 = arith.index_cast %15 : i32 to index
    %c0_4 = arith.constant 0 : index
    %19 = vector.load %arg6[%c0_3, %18, %c0_4] : memref<1x8x128xf32, #tpu.memory_space<vmem>>, vector<1x1x128xf32>
    %20 = vector.shape_cast %19 : vector<1x1x128xf32> to vector<1x128xf32>
    %21 = vector.shape_cast %17 : vector<1x128xf32> to vector<1x1x128xf32>
    tpu.vector_store %arg6[%c0_3, %18, %c0_4], %21 {strides = array<i32>} : memref<1x8x128xf32, #tpu.memory_space<vmem>>, vector<1x1x128xf32>,
    return
  }
  func.func @transform_0(%arg0: i32, %arg1: i32, %arg2: memref<4xi32, #tpu.memory_space<smem>>, %arg3: memref<4xi32, #tpu.memory_space<smem>>) -> (i32, i32, i32) {
    %c2_i32 = arith.constant 2 : i32
    %0 = arith.muli %c2_i32, %arg0 : i32
    %1 = arith.addi %0, %arg1 : i32
    %2 = arith.index_cast %1 : i32 to index
    %3 = memref.load %arg2[%2] : memref<4xi32, #tpu.memory_space<smem>>
    %c0_i32 = arith.constant 0 : i32
    %c0_i32_0 = arith.constant 0 : i32
    return %arg0, %3, %c0_i32 : i32, i32, i32
  }
  func.func @transform_1(%arg0: i32, %arg1: i32, %arg2: memref<4xi32, #tpu.memory_space<smem>>, %arg3: memref<4xi32, #tpu.memory_space<smem>>) -> (i32, i32) {
    %c0_i32 = arith.constant 0 : i32
    %c0_i32_0 = arith.constant 0 : i32
    %c0_i32_1 = arith.constant 0 : i32
    return %c0_i32, %c0_i32_0 : i32, i32
  }
  func.func @transform_2(%arg0: i32, %arg1: i32, %arg2: memref<4xi32, #tpu.memory_space<smem>>, %arg3: memref<4xi32, #tpu.memory_space<smem>>) -> (i32, i32, i32) {
    %c2_i32 = arith.constant 2 : i32
    %0 = arith.muli %c2_i32, %arg0 : i32
    %1 = arith.addi %0, %arg1 : i32
    %2 = arith.index_cast %1 : i32 to index
    %3 = memref.load %arg2[%2] : memref<4xi32, #tpu.memory_space<smem>>
    %c0_i32 = arith.constant 0 : i32
    %c0_i32_0 = arith.constant 0 : i32
    return %arg0, %3, %c0_i32 : i32, i32, i32
  }
}

</mosaic_0001>

<llo_original>
// kernel: mask_forward.1
$region0: #{mask_forward.1}
  #allocation0 [shape = 'u32[]', space=smem, size = 0x4, offset = 0x4, fixed_abs, tag = 'smem constant byte address 0x4 - core index']
  #allocation1 [shape = 'u32[144,128]{1,0:T(1,128)}', space=vmem, size = 0x12000, scoped, tag = 'internal scratch']
  #allocation2 [shape = 's32[1]{0}', space=sflag, size = 0x4, scoped, tag = 'scoped memory for mask_forward.1']
  #allocation3 [shape = 'u8[512]{0}', space=smem, size = 0x200, scoped, tag = 'prefetched SMEM operand 0']
  #allocation4 [shape = 'u8[512]{0}', space=smem, size = 0x200, scoped, tag = 'prefetched SMEM operand 1']
  %s0 = inlined_call_operand.vmem [shape: s32[4], index: 0, kind: input, shape index: {}]
  %s1 = inlined_call_operand.vmem [shape: s32[4], index: 1, kind: input, shape index: {}]
  %s2 = inlined_call_operand.hbm [shape: f32[2,16,128], index: 2, kind: input, shape index: {}, may-alias: {2,4}]
  %s3 = inlined_call_operand.vmem [shape: f32[2,128], index: 3, kind: input, shape index: {}]
  %s4 = inlined_call_operand.hbm [shape: f32[2,16,128], index: 4, kind: output, shape index: {}, may-alias: {2,4}]
  %s5 = sld [smem:[#allocation0]]
  $region49: #{mask_forward.1} parent=0
    _
  %s7 = ssub.s32 1, %s5
  %s8 = scalar_select 0, %s7, %s5
  %s9 = sshll.u32 %s0, 4
  %s10 = int_to_ptr.vmem [resolvable:$true] %s9
  %12 = dma.vmem_to_smem %s10, 16, [#allocation3], [#allocation2]
  %s13 = sshll.u32 %s1, 4
  %s14 = int_to_ptr.vmem [resolvable:$true] %s13
  %16 = dma.vmem_to_smem %s14, 16, [#allocation4], [#allocation2]
  %17 = dma.done [#allocation2], 32
  %18 = sfence
  $region1: #{mask_forward.1} parent=0
    #allocation5 [shape = 'u8[8192]{0}', space=vmem, size = 0x2000, scoped, tag = 'input window, operand 2']
    #allocation6 [shape = 's32[2]{0}', space=sflag, size = 0x8, scoped, tag = 'scoped memory for mask_forward.1']
    #allocation7 [shape = 's32[2]{0}', space=sflag, size = 0x8, scoped, tag = 'scoped memory for mask_forward.1']
    #allocation8 [shape = 'u8[8192]{0}', space=vmem, size = 0x2000, scoped, tag = 'output window, operand 0']
    %19 = vsyncpa [#allocation6], 0
    %s20 = scalar_lea.sflag [#allocation6], 1
    %21 = vsyncpa %s20, 0
    %22 = vsyncpa [#allocation7], 0
    %s23 = scalar_lea.sflag [#allocation7], 1
    %24 = vsyncpa %s23, 0
    loop: start=0, step=1, limit=6
    $region2: #{mask_forward.1} parent=1 // loop_pre_header
      _
    $region3: #{mask_forward.1} parent=1 // loop_header
      %s26 = sphi 0, %s30
      %p27 = scmp.ge.s32.totalorder %s26, 6
      %s33 = sphi 0, %s45
      %s34 = sphi 0, %s41
      %s35 = sphi 0, %s33
      %s36 = sphi 0, %s34
      %s37 = sphi 0, %s35
      %s38 = sphi 0, %s36
      %s56 = sphi 0, %s58
      %s59 = sphi 0, %s56
      %s60 = sphi 0, %s59
      %s76 = sphi 0, %s60
      %s80 = sphi 0, %s80
      %s82 = sphi 0, %s80
      %s83 = sphi 0, %s82
      %s97 = sphi 0, %s83
      %s111 = sphi 0, %s113
      %s114 = sphi 0, %s111
      %s115 = sphi 0, %s114
      %s131 = sphi 0, %s115
    $region4: #{mask_forward.1} parent=1 // loop_header_branch
      %29 = sbr.rel (%p27) target = $region8
    $region5: #{mask_forward.1} parent=1 // loop_body
      %s31 = ssub.s32 %s26, 1
      %s32 = ssub.s32 %s26, 2
      %s39 = sadd.s32 1, %s34
      %p40 = scmp.ge.s32.totalorder %s39, 2
      %s41 = scalar_select %p40, 0, %s39
      %s42 = sadd.s32 1, %s33
      %s43 = scalar_select %p40, %s42, %s33
      %p44 = scmp.ge.s32.totalorder %s43, 2
      %s45 = scalar_select %p44, 0, %s43
      %s46 = smul.u32 %s33, 2
      %s47 = sadd.s32 %s46, %s34
      %s48 = sld [smem:[#allocation3 + %s47]]
      %s49 = smul.u32 %s45, 2
      %s50 = sadd.s32 %s49, %s41
      %s51 = sld [smem:[#allocation3 + %s50]]
      %s52 = ssub.s32 %s33, %s45
      %s53 = ssub.s32 %s48, %s51
      %s54 = sor.u32 %s52, %s53
      %p55 = scmp.eq.s32.totalorder %s54, 0
      %s57 = sadd.s32 %s56, 1
      %s58 = scalar_select %p55, %s56, %s57
      %p61 = pneg %p55
      %p62 = scmp.eq.s32.totalorder %s26, 3
      %p63 = por %p61, %p62
      %p64 = scmp.ne.s32.totalorder %s56, %s59
      %p65 = scmp.eq.s32.totalorder %s26, 0
      %p66 = por %p64, %p65
      %p67 = scmp.ne.s32.totalorder %s56, %s59
      %p68 = scmp.eq.s32.totalorder %s31, 3
      %p69 = por %p67, %p68
      %p70 = scmp.ne.s32.totalorder %s59, %s60
      %p71 = scmp.eq.s32.totalorder %s31, 0
      %p72 = por %p70, %p71
      %p73 = scmp.ne.s32.totalorder %s59, %s60
      %p74 = scmp.eq.s32.totalorder %s32, 3
      %p75 = por %p73, %p74
      %p77 = scmp.ne.s32.totalorder %s60, %s76
      %p78 = scmp.eq.s32.totalorder %s32, 0
      %p79 = por %p77, %p78
      %s81 = sadd.s32 %s80, 1
      %p84 = scmp.eq.s32.totalorder %s26, 3
      %p85 = scmp.ne.s32.totalorder %s80, %s82
      %p86 = scmp.eq.s32.totalorder %s26, 0
      %p87 = por %p85, %p86
      %p88 = scmp.ne.s32.totalorder %s80, %s82
      %p89 = scmp.eq.s32.totalorder %s31, 3
      %p90 = por %p88, %p89
      %p91 = scmp.ne.s32.totalorder %s82, %s83
      %p92 = scmp.eq.s32.totalorder %s31, 0
      %p93 = por %p91, %p92
      %p94 = scmp.ne.s32.totalorder %s82, %s83
      %p95 = scmp.eq.s32.totalorder %s32, 3
      %p96 = por %p94, %p95
      %p98 = scmp.ne.s32.totalorder %s83, %s97
      %p99 = scmp.eq.s32.totalorder %s32, 0
      %p100 = por %p98, %p99
      %s101 = smul.u32 %s33, 2
      %s102 = sadd.s32 %s101, %s34
      %s103 = sld [smem:[#allocation3 + %s102]]
      %s104 = smul.u32 %s45, 2
      %s105 = sadd.s32 %s104, %s41
      %s106 = sld [smem:[#allocation3 + %s105]]
      %s107 = ssub.s32 %s33, %s45
      %s108 = ssub.s32 %s103, %s106
      %s109 = sor.u32 %s107, %s108
      %p110 = scmp.eq.s32.totalorder %s109, 0
      %s112 = sadd.s32 %s111, 1
      %s113 = scalar_select %p110, %s111, %s112
      %p116 = pneg %p110
      %p117 = scmp.eq.s32.totalorder %s26, 3
      %p118 = por %p116, %p117
      %p119 = scmp.ne.s32.totalorder %s111, %s114
      %p120 = scmp.eq.s32.totalorder %s26, 0
      %p121 = por %p119, %p120
      %p122 = scmp.ne.s32.totalorder %s111, %s114
      %p123 = scmp.eq.s32.totalorder %s31, 3
      %p124 = por %p122, %p123
      %p125 = scmp.ne.s32.totalorder %s114, %s115
      %p126 = scmp.eq.s32.totalorder %s31, 0
      %p127 = por %p125, %p126
      %p128 = scmp.ne.s32.totalorder %s114, %s115
      %p129 = scmp.eq.s32.totalorder %s32, 3
      %p130 = por %p128, %p129
      %p132 = scmp.ne.s32.totalorder %s115, %s131
      %p133 = scmp.eq.s32.totalorder %s32, 0
      %p134 = por %p132, %p133
      %p135 = scmp.le.s32.totalorder 1, %s26
      %p136 = scmp.lt.s32.totalorder %s26, 5
      %p137 = pnand %p135, %p136
      %p138 = pneg %p137
      // Predicated region
      $region9: #{mask_forward.1} parent=5 // pred_check
        _
      $region10: #{mask_forward.1} parent=5 // pred_check_branch
        %140 = sbr.rel (%p137) target = $region12
      $region11: #{mask_forward.1} parent=5 // pred_region
        %s141 = ssub.s32 %s26, 1
        // Predicated region
        $region13: #{mask_forward.1} parent=11 // pred_check
          %p142 = pneg %p93
        $region14: #{mask_forward.1} parent=11 // pred_check_branch
          %144 = sbr.rel (%p142) target = $region16
        $region15: #{mask_forward.1} parent=11 // pred_region
          _
        $region16: #{mask_forward.1} parent=11 // pred_fallthru
          _
      $region12: #{mask_forward.1} parent=5 // pred_fallthru
        _
      %p145 = scmp.lt.s32.totalorder %s26, 4
      // Predicated region
      $region17: #{mask_forward.1} parent=5 // pred_check
        %p146 = pneg %p145
      $region18: #{mask_forward.1} parent=5 // pred_check_branch
        %148 = sbr.rel (%p146) target = $region20
      $region19: #{mask_forward.1} parent=5 // pred_region
        // Predicated region
        $region21: #{mask_forward.1} parent=19 // pred_check
          %p149 = pneg %p66
        $region22: #{mask_forward.1} parent=19 // pred_check_branch
          %151 = sbr.rel (%p149) target = $region24
        $region23: #{mask_forward.1} parent=19 // pred_region
          %s152 = sand.u32 %s56, 1
          %s153 = scalar_lea.sflag [#allocation6], %s152
          %s154 = sand.u32 %s56, 1
          %s155 = smul.addr %s154, 8
          %s156 = scalar_lea.vmem [#allocation5], %s155
          %s157 = smul.u32 %s33, 2
          %s158 = sadd.s32 %s157, %s34
          %s159 = sld [smem:[#allocation3 + %s158]]
          %s161 = ssub.s32 128, 128
          %162 = vsyncadd %s153, %s161
          %s163 = smul.addr %s33, 2
          %s164 = sadd.s32 %s159, %s163
          %s165 = smul.addr %s164, 128
          %s166 = scalar_lea.hbm %s2, %s165
          %s168 = sshll.u32 %s156, 4
          %s169 = int_to_ptr.vmem [resolvable:$true] %s168
          %171 = dma.hbm_to_vmem [thread:$0]  %s166, 128, %s169, %s153
        $region24: #{mask_forward.1} parent=19 // pred_fallthru
          _
      $region20: #{mask_forward.1} parent=5 // pred_fallthru
        _
      %p172 = scmp.le.s32.totalorder 1, %s26
      %p173 = scmp.lt.s32.totalorder %s26, 5
      %p174 = pnand %p172, %p173
      %p175 = pneg %p174
      // Predicated region
      $region25: #{mask_forward.1} parent=5 // pred_check
        _
      $region26: #{mask_forward.1} parent=5 // pred_check_branch
        %177 = sbr.rel (%p174) target = $region28
      $region27: #{mask_forward.1} parent=5 // pred_region
        %s178 = ssub.s32 %s26, 1
        %s179 = sand.u32 %s59, 1
        %s180 = scalar_lea.sflag [#allocation6], %s179
        %s181 = sand.u32 %s59, 1
        %s182 = smul.addr %s181, 8
        %s183 = scalar_lea.vmem [#allocation5], %s182
        // Predicated region
        $region29: #{mask_forward.1} parent=27 // pred_check
          %p184 = pneg %p72
        $region30: #{mask_forward.1} parent=27 // pred_check_branch
          %186 = sbr.rel (%p184) target = $region32
        $region31: #{mask_forward.1} parent=27 // pred_region
          %187 = dma.done %s180, 128
        $region32: #{mask_forward.1} parent=27 // pred_fallthru
          _
        %s188 = sand.u32 %s59, 1
        %s189 = scalar_lea.sflag [#allocation6], %s188
        %s190 = sand.u32 %s59, 1
        %s191 = smul.addr %s190, 8
        %s192 = scalar_lea.vmem [#allocation5], %s191
        %p193 = pneg %p72
        %p194 = pneg %p69
        %p195 = pneg %p93
        %p196 = pneg %p90
        %p197 = pneg %p127
        %p198 = pneg %p124
        %s199 = sand.u32 %s114, 1
        %s200 = scalar_lea.sflag [#allocation7], %s199
        %s201 = sand.u32 %s114, 1
        %s202 = smul.addr %s201, 8
        %s203 = scalar_lea.vmem [#allocation8], %s202
        %s204 = smul.u32 %s35, 2
        %s205 = sadd.s32 %s204, %s36
        %s206 = sld [smem:[#allocation3 + %s205]]
        %s207 = smul.u32 %s35, 2
        %s208 = sadd.s32 %s207, %s36
        %s209 = sld [smem:[#allocation3 + %s208]]
        %p210 = scmp.eq.s32.totalorder %s36, 0
        %s211 = smul.u32 %s35, 2
        %s212 = sld [smem:[#allocation3 + %s211]]
        %s213 = sadd.s32 %s211, 1
        %s214 = sld [smem:[#allocation3 + %s213]]
        %p215 = scmp.ne.s32.totalorder %s212, %s214
        %p216 = por %p210, %p215
        // Predicated region
        $region33: #{mask_forward.1} parent=27 // pred_check
          %p217 = pneg %p216
        $region34: #{mask_forward.1} parent=27 // pred_check_branch
          %219 = sbr.rel (%p217) target = $region36
        $region35: #{mask_forward.1} parent=27 // pred_region
          %v220 = vld [vmem:[%s183] sm:$0xff]
          %221 = vst [vmem:[%s203] sm:$0xff] %v220
        $region36: #{mask_forward.1} parent=27 // pred_fallthru
          _
        %s222 = sadd.s32 %s211, %s36
        %s223 = sld [smem:[#allocation4 + %s222]]
        %s224 = scalar_lea.vmem %s3, %s36
        %v225 = vld [vmem:[%s224] sm:$0x1]
        %s226 = scalar_lea.vmem %s203, %s223 [#allocation8]
        %227 = vst [vmem:[%s226] sm:$0x1] %v225
        %s228 = sand.u32 %s114, 1
        %s229 = scalar_lea.sflag [#allocation7], %s228
        %s230 = sand.u32 %s114, 1
        %s231 = smul.addr %s230, 8
        %s232 = scalar_lea.vmem [#allocation8], %s231
        // Predicated region
        $region37: #{mask_forward.1} parent=27 // pred_check
          %p233 = pneg %p124
        $region38: #{mask_forward.1} parent=27 // pred_check_branch
          %235 = sbr.rel (%p233) target = $region40
        $region39: #{mask_forward.1} parent=27 // pred_region
          %s236 = smul.u32 %s35, 2
          %s237 = sadd.s32 %s236, %s36
          %s238 = sld [smem:[#allocation3 + %s237]]
          %s240 = ssub.s32 128, 128
          %241 = vsyncadd %s229, %s240
          %s242 = smul.addr %s35, 2
          %s243 = sadd.s32 %s238, %s242
          %s244 = smul.addr %s243, 128
          %s245 = scalar_lea.hbm %s4, %s244
          %s247 = sshll.u32 %s232, 4
          %s248 = int_to_ptr.vmem [resolvable:$true] %s247
          %250 = dma.vmem_to_hbm [thread:$0]  %s248, 128, %s245, %s229
        $region40: #{mask_forward.1} parent=27 // pred_fallthru
          _
      $region28: #{mask_forward.1} parent=5 // pred_fallthru
        _
      %p251 = scmp.le.s32.totalorder 2, %s26
      // Predicated region
      $region41: #{mask_forward.1} parent=5 // pred_check
        %p252 = pneg %p251
      $region42: #{mask_forward.1} parent=5 // pred_check_branch
        %254 = sbr.rel (%p252) target = $region44
      $region43: #{mask_forward.1} parent=5 // pred_region
        %s255 = ssub.s32 %s26, 2
        // Predicated region
        $region45: #{mask_forward.1} parent=43 // pred_check
          %p256 = pneg %p130
        $region46: #{mask_forward.1} parent=43 // pred_check_branch
          %258 = sbr.rel (%p256) target = $region48
        $region47: #{mask_forward.1} parent=43 // pred_region
          %s259 = sand.u32 %s115, 1
          %s260 = scalar_lea.sflag [#allocation7], %s259
          %s261 = sand.u32 %s115, 1
          %s262 = smul.addr %s261, 8
          %s263 = scalar_lea.vmem [#allocation8], %s262
          %264 = dma.done %s260, 128
        $region48: #{mask_forward.1} parent=43 // pred_fallthru
          _
      $region44: #{mask_forward.1} parent=5 // pred_fallthru
        _
    $region6: #{mask_forward.1} parent=1 // loop_footer
      %s30 = sadd.s32 1, %s26
    $region7: #{mask_forward.1} parent=1 // loop_footer_branch
      %25 = sbr.rel target = $region3
    $region8: #{mask_forward.1} parent=1 // loop_exit
      _
    %265 = vsyncpa [#allocation6], 1
    %s266 = scalar_lea.sflag [#allocation6], 1
    %267 = vsyncpa %s266, 1
    %268 = vsyncpa [#allocation7], 1
    %s269 = scalar_lea.sflag [#allocation7], 1
    %270 = vsyncpa %s269, 1

</llo_original>
